<compile_context>
chip_gen: v7x
topology: tpu7x:2x2x1
jax: 0.10.0
libtpu: 0.0.40
codegen_flags: <defaults>
</compile_context>

<pallas_src>
import math
import functools

import jax
import jax.numpy as jnp
from jax import lax
from jax.experimental import pallas as pl
from jax.experimental.pallas import tpu as pltpu

_VMEM_LIMIT = 32 * 1024 * 1024  # explicit; <= physical on v5e/v6e/v7x


def _round_up(x, m):
    return ((x + m - 1) // m) * m


def _choose_m_tiling(m):
    """Row tile + padded row count for the projection GEMM (no ragged cliff)."""
    for t in (512, 256, 128):
        if m % t == 0:
            return t, m
    if m <= 512:
        m_pad = _round_up(m, 8)
        return m_pad, m_pad
    return 256, _round_up(m, 256)


def _choose_n_tile(e):
    """Output-feature tile for the projection (128-multiple or full E)."""
    for t in (512, 256, 128):
        if e % t == 0:
            return t
    return e


def _choose_q_tile(s):
    """Query-row tile for attention (multiple of 8 dividing S, or full S)."""
    for t in (256, 128, 64, 32, 16, 8):
        if s % t == 0:
            return t
    return s


# ----------------------------------------------------------------------------
# Kernel 1: fused Q/K/V projection.
#   x tile is read from HBM once per (i, j) step and drives three bf16 MXU
#   GEMMs with f32 accumulation; outputs are bf16 (halved HBM round trip).
# ----------------------------------------------------------------------------
def qkv_proj_kernel(x_ref, wq_ref, wk_ref, wv_ref, bq_ref, bk_ref, bv_ref,
                    q_ref, k_ref, v_ref):
    x = x_ref[...]                                           # [tm, E] bf16
    q = jnp.dot(x, wq_ref[...], preferred_element_type=jnp.float32) + bq_ref[...]
    k = jnp.dot(x, wk_ref[...], preferred_element_type=jnp.float32) + bk_ref[...]
    v = jnp.dot(x, wv_ref[...], preferred_element_type=jnp.float32) + bv_ref[...]
    q_ref[...] = q.astype(q_ref.dtype)
    k_ref[...] = k.astype(k_ref.dtype)
    v_ref[...] = v.astype(v_ref.dtype)


def fused_qkv_projection(x2d, wq, wk, wv, bq, bk, bv):
    """x2d: [M, E] bf16 -> (q, k, v) each [M, E] bf16. Tiled over M and E."""
    M, E = x2d.shape
    tm, m_pad = _choose_m_tiling(M)
    tn = _choose_n_tile(E)
    if m_pad != M:
        x2d = jnp.pad(x2d, ((0, m_pad - M), (0, 0)))

    w_spec = pl.BlockSpec((E, tn), lambda i, j: (0, j))
    b_spec = pl.BlockSpec((1, tn), lambda i, j: (0, j))
    o_spec = pl.BlockSpec((tm, tn), lambda i, j: (i, j))
    out_sd = jax.ShapeDtypeStruct((m_pad, E), jnp.bfloat16)

    q, k, v = pl.pallas_call(
        qkv_proj_kernel,
        out_shape=(out_sd, out_sd, out_sd),
        grid=(m_pad // tm, E // tn),
        in_specs=[
            pl.BlockSpec((tm, E), lambda i, j: (i, 0)),      # x tile (bf16)
            w_spec, w_spec, w_spec,                          # bf16 weights, N-tiled
            b_spec, b_spec, b_spec,                          # f32 biases
        ],
        out_specs=(o_spec, o_spec, o_spec),
        compiler_params=pltpu.CompilerParams(
            dimension_semantics=("parallel", "parallel"),
            vmem_limit_bytes=_VMEM_LIMIT),
    )(x2d, wq, wk, wv, bq, bk, bv)

    if m_pad != M:
        q, k, v = q[:M], k[:M], v[:M]
    return q, k, v


# ----------------------------------------------------------------------------
# Kernel 2: multi-head attention, grid = (batch, q-tile).
#   K/V stay per-batch resident; Q rows are tiled. All heads per grid step.
# ----------------------------------------------------------------------------
def attn_kernel(q_ref, k_ref, v_ref, mask_ref, o_ref, *, num_heads, head_dim):
    # q_ref: [1, tq, E] bf16   k/v_ref: [1, S, E] bf16
    # mask_ref: [1, 1, S] f32  o_ref: [1, tq, E] f32
    m = mask_ref[0]                                          # [1, S], broadcasts over rows

    for h in range(num_heads):                               # unrolled per-head MXU work
        lo = h * head_dim
        hi = lo + head_dim
        q = q_ref[0, :, lo:hi]                               # [tq, D] bf16 (scale folded in wq)
        k = k_ref[0, :, lo:hi]                               # [S,  D] bf16
        v = v_ref[0, :, lo:hi]                               # [S,  D] bf16

        # scores[i, j] = sum_d q[i, d] * k[j, d]  (no explicit k.T relayout)
        scores = lax.dot_general(
            q, k, dimension_numbers=(((1,), (1,)), ((), ())),
            preferred_element_type=jnp.float32)              # [tq, S] f32
        scores = scores + m                                  # additive mask

        # numerically-stable softmax; keep exp/sum in f32 (v5e-safe).
        s_max = jnp.max(scores, axis=-1, keepdims=True)
        e = jnp.exp(scores - s_max)                          # [tq, S] f32
        denom = jnp.sum(e, axis=-1, keepdims=True)           # [tq, 1] f32

        # dropout == identity (eval mode)
        # post-PV normalization: multiply touches tq*D values, not tq*S.
        ctx = jnp.dot(e.astype(v.dtype), v,
                      preferred_element_type=jnp.float32)    # [tq, D] f32
        ctx = ctx * pl.reciprocal(denom, approx=True)

        # per-head slice store lands in the VMEM output block; HBM writeback
        # remains one lane-dense [tq, E] DMA.
        o_ref[0, :, lo:hi] = ctx.astype(o_ref.dtype)


# ----------------------------------------------------------------------------
# Wrapper
# ----------------------------------------------------------------------------
def syntax_bert_self_attention(hidden_state, attention_mask, params, num_attn_heads):
    """Pallas implementation of SyntaxBertSelfAttention.forward (eval mode).

    hidden_state:   [B, S, E] float32
    attention_mask: [B, 1, 1, S] float32 additive mask
    params: wq/wk/wv ([E, E], pre-transposed so y = x @ w + b) and bq/bk/bv ([E]).
    """
    B, S, E = hidden_state.shape
    head_dim = E // num_attn_heads
    assert num_attn_heads * head_dim == E

    # Fold the 1/sqrt(H) scale into the query projection at load time, cast
    # MXU weight operands to bf16 (f32 accumulation happens in the kernels).
    scale = 1.0 / math.sqrt(num_attn_heads)                  # module divides by sqrt(H)
    wq = (params["wq"] * scale).astype(jnp.bfloat16)
    wk = params["wk"].astype(jnp.bfloat16)
    wv = params["wv"].astype(jnp.bfloat16)
    bq = (params["bq"] * scale).reshape(1, E).astype(jnp.float32)
    bk = params["bk"].reshape(1, E).astype(jnp.float32)
    bv = params["bv"].reshape(1, E).astype(jnp.float32)

    x2d = hidden_state.reshape(B * S, E).astype(jnp.bfloat16)    # bf16 MXU operand
    q2d, k2d, v2d = fused_qkv_projection(x2d, wq, wk, wv, bq, bk, bv)

    q3d = q2d.reshape(B, S, E)                               # free reshapes, bf16
    k3d = k2d.reshape(B, S, E)
    v3d = v2d.reshape(B, S, E)
    mask3d = attention_mask.reshape(B, 1, S)

    tq = _choose_q_tile(S)
    kernel = functools.partial(attn_kernel, num_heads=num_attn_heads,
                               head_dim=head_dim)

    ctx = pl.pallas_call(
        kernel,
        out_shape=jax.ShapeDtypeStruct((B, S, E), hidden_state.dtype),
        grid=(B, S // tq),
        in_specs=[
            pl.BlockSpec((1, tq, E), lambda b, qi: (b, qi, 0)),  # Q tile
            pl.BlockSpec((1, S, E), lambda b, qi: (b, 0, 0)),    # K (per-batch resident)
            pl.BlockSpec((1, S, E), lambda b, qi: (b, 0, 0)),    # V (per-batch resident)
            pl.BlockSpec((1, 1, S), lambda b, qi: (b, 0, 0)),    # mask once per batch
        ],
        out_specs=pl.BlockSpec((1, tq, E), lambda b, qi: (b, qi, 0)),  # final [B,S,H*D]
        compiler_params=pltpu.CompilerParams(
            dimension_semantics=("parallel", "parallel"),
            vmem_limit_bytes=_VMEM_LIMIT),
    )(q3d, k3d, v3d, mask3d)

    return ctx   # already [B, S, all_head_size]; no wrapper transpose needed


# ----------------------------------------------------------------------------
# Pure-JAX reference (f32, for sanity check)
# ----------------------------------------------------------------------------
def reference(hidden_state, attention_mask, params, num_attn_heads):
    B, S, E = hidden_state.shape
    head_dim = E // num_attn_heads

    def proj(w, b):
        y = hidden_state @ w + b
        return y.reshape(B, S, num_attn_heads, head_dim).transpose(0, 2, 1, 3)

    q = proj(params["wq"], params["bq"])
    k = proj(params["wk"], params["bk"])
    v = proj(params["wv"], params["bv"])
    scores = jnp.einsum("bhqd,bhkd->bhqk", q, k) / math.sqrt(num_attn_heads)
    scores = scores + attention_mask
    probs = jax.nn.softmax(scores, axis=-1)
    ctx = jnp.einsum("bhqk,bhkd->bhqd", probs, v)
    return ctx.transpose(0, 2, 1, 3).reshape(B, S, E)


# ----------------------------------------------------------------------------
# Main
# ----------------------------------------------------------------------------
if __name__ == "__main__":
    # Small config consistent with the module: n_embd=32, n_layer=4
    #   -> num_attn_heads = 4, attn_head_size = 8, all_head_size = 32
    B, S, E = 2, 8, 32
    num_attn_heads = 4

    key = jax.random.PRNGKey(0)
    k_x, k_wq, k_wk, k_wv, k_bq, k_bk, k_bv = jax.random.split(key, 7)

    hidden_state = jax.random.normal(k_x, (B, S, E), dtype=jnp.float32)

    # Additive attention mask [B, 1, 1, S]: mask out last 2 keys of batch 1.
    mask = jnp.zeros((B, 1, 1, S), dtype=jnp.float32)
    mask = mask.at[1, 0, 0, -2:].set(-10000.0)

    params = {
        "wq": 0.02 * jax.random.normal(k_wq, (E, E), dtype=jnp.float32),
        "wk": 0.02 * jax.random.normal(k_wk, (E, E), dtype=jnp.float32),
        "wv": 0.02 * jax.random.normal(k_wv, (E, E), dtype=jnp.float32),
        "bq": 0.02 * jax.random.normal(k_bq, (E,), dtype=jnp.float32),
        "bk": 0.02 * jax.random.normal(k_bk, (E,), dtype=jnp.float32),
        "bv": 0.02 * jax.random.normal(k_bv, (E,), dtype=jnp.float32),
    }

    out = syntax_bert_self_attention(hidden_state, mask, params, num_attn_heads)
    out = jax.block_until_ready(out)

    ref = reference(hidden_state, mask, params, num_attn_heads)
    assert out.shape == (B, S, E)
    # Tolerance accounts for bf16 MXU operands / bf16 q,k,v intermediate and
    # the EUP approximate reciprocal (applied post-PV, f32 softmax stats).
    assert jnp.allclose(out, ref, atol=1e-2, rtol=1e-2), "mismatch vs reference"

    print("KERNEL_OK")
</pallas_src>

<mosaic_0001>
module attributes {stable_mosaic.version = 11 : i64} {
  func.func @qkv_proj_kernel(%arg0: i32, %arg1: i32, %arg2: memref<16x32xbf16, #tpu.memory_space<vmem>>, %arg3: memref<32x32xbf16, #tpu.memory_space<vmem>>, %arg4: memref<32x32xbf16, #tpu.memory_space<vmem>>, %arg5: memref<32x32xbf16, #tpu.memory_space<vmem>>, %arg6: memref<1x32xf32, #tpu.memory_space<vmem>>, %arg7: memref<1x32xf32, #tpu.memory_space<vmem>>, %arg8: memref<1x32xf32, #tpu.memory_space<vmem>>, %arg9: memref<16x32xbf16, #tpu.memory_space<vmem>>, %arg10: memref<16x32xbf16, #tpu.memory_space<vmem>>, %arg11: memref<16x32xbf16, #tpu.memory_space<vmem>>) attributes {dimension_semantics = [#tpu.dimension_semantics<parallel>, #tpu.dimension_semantics<parallel>], iteration_bounds = array<i64: 1, 1>, scalar_prefetch = 0 : i64, scratch_operands = 0 : i64, tpu.core_type = #tpu.core_type<tc>, window_params = [{transform_indices = @transform_0, window_bounds = array<i64: 16, 32>}, {transform_indices = @transform_1, window_bounds = array<i64: 32, 32>}, {transform_indices = @transform_2, window_bounds = array<i64: 32, 32>}, {transform_indices = @transform_3, window_bounds = array<i64: 32, 32>}, {transform_indices = @transform_4, window_bounds = array<i64: 1, 32>}, {transform_indices = @transform_5, window_bounds = array<i64: 1, 32>}, {transform_indices = @transform_6, window_bounds = array<i64: 1, 32>}, {transform_indices = @transform_7, window_bounds = array<i64: 16, 32>}, {transform_indices = @transform_8, window_bounds = array<i64: 16, 32>}, {transform_indices = @transform_9, window_bounds = array<i64: 16, 32>}]} {
    %c0 = arith.constant 0 : index
    %c0_0 = arith.constant 0 : index
    %0 = vector.load %arg2[%c0, %c0_0] : memref<16x32xbf16, #tpu.memory_space<vmem>>, vector<16x32xbf16>
    %c0_1 = arith.constant 0 : index
    %c0_2 = arith.constant 0 : index
    %1 = vector.load %arg3[%c0_1, %c0_2] : memref<32x32xbf16, #tpu.memory_space<vmem>>, vector<32x32xbf16>
    %cst = arith.constant dense<0.000000e+00> : vector<16x32xf32>
    %2 = tpu.matmul %0, %1, %cst {dimension_numbers = #tpu.dot_dimension_numbers<[1], [0], [0], [1], [0, 0, 1, 1], [], []>} : vector<16x32xbf16>, vector<32x32xbf16>, vector<16x32xf32> -> vector<16x32xf32>
    %c0_3 = arith.constant 0 : index
    %c0_4 = arith.constant 0 : index
    %3 = vector.load %arg6[%c0_3, %c0_4] : memref<1x32xf32, #tpu.memory_space<vmem>>, vector<1x32xf32>
    %4 = vector.broadcast %3 : vector<1x32xf32> to vector<16x32xf32>
    %5 = arith.addf %2, %4 : vector<16x32xf32>
    %c0_5 = arith.constant 0 : index
    %c0_6 = arith.constant 0 : index
    %6 = vector.load %arg4[%c0_5, %c0_6] : memref<32x32xbf16, #tpu.memory_space<vmem>>, vector<32x32xbf16>
    %cst_7 = arith.constant dense<0.000000e+00> : vector<16x32xf32>
    %7 = tpu.matmul %0, %6, %cst_7 {dimension_numbers = #tpu.dot_dimension_numbers<[1], [0], [0], [1], [0, 0, 1, 1], [], []>} : vector<16x32xbf16>, vector<32x32xbf16>, vector<16x32xf32> -> vector<16x32xf32>
    %c0_8 = arith.constant 0 : index
    %c0_9 = arith.constant 0 : index
    %8 = vector.load %arg7[%c0_8, %c0_9] : memref<1x32xf32, #tpu.memory_space<vmem>>, vector<1x32xf32>
    %9 = vector.broadcast %8 : vector<1x32xf32> to vector<16x32xf32>
    %10 = arith.addf %7, %9 : vector<16x32xf32>
    %c0_10 = arith.constant 0 : index
    %c0_11 = arith.constant 0 : index
    %11 = vector.load %arg5[%c0_10, %c0_11] : memref<32x32xbf16, #tpu.memory_space<vmem>>, vector<32x32xbf16>
    %cst_12 = arith.constant dense<0.000000e+00> : vector<16x32xf32>
    %12 = tpu.matmul %0, %11, %cst_12 {dimension_numbers = #tpu.dot_dimension_numbers<[1], [0], [0], [1], [0, 0, 1, 1], [], []>} : vector<16x32xbf16>, vector<32x32xbf16>, vector<16x32xf32> -> vector<16x32xf32>
    %c0_13 = arith.constant 0 : index
    %c0_14 = arith.constant 0 : index
    %13 = vector.load %arg8[%c0_13, %c0_14] : memref<1x32xf32, #tpu.memory_space<vmem>>, vector<1x32xf32>
    %14 = vector.broadcast %13 : vector<1x32xf32> to vector<16x32xf32>
    %15 = arith.addf %12, %14 : vector<16x32xf32>
    %16 = arith.truncf %5 : vector<16x32xf32> to vector<16x32xbf16>
    %c0_15 = arith.constant 0 : index
    %c0_16 = arith.constant 0 : index
    %17 = vector.load %arg9[%c0_15, %c0_16] : memref<16x32xbf16, #tpu.memory_space<vmem>>, vector<16x32xbf16>
    tpu.vector_store %arg9[%c0_15, %c0_16], %16 {strides = array<i32>} : memref<16x32xbf16, #tpu.memory_space<vmem>>, vector<16x32xbf16>,
    %18 = arith.truncf %10 : vector<16x32xf32> to vector<16x32xbf16>
    %c0_17 = arith.constant 0 : index
    %c0_18 = arith.constant 0 : index
    %19 = vector.load %arg10[%c0_17, %c0_18] : memref<16x32xbf16, #tpu.memory_space<vmem>>, vector<16x32xbf16>
    tpu.vector_store %arg10[%c0_17, %c0_18], %18 {strides = array<i32>} : memref<16x32xbf16, #tpu.memory_space<vmem>>, vector<16x32xbf16>,
    %20 = arith.truncf %15 : vector<16x32xf32> to vector<16x32xbf16>
    %c0_19 = arith.constant 0 : index
    %c0_20 = arith.constant 0 : index
    %21 = vector.load %arg11[%c0_19, %c0_20] : memref<16x32xbf16, #tpu.memory_space<vmem>>, vector<16x32xbf16>
    tpu.vector_store %arg11[%c0_19, %c0_20], %20 {strides = array<i32>} : memref<16x32xbf16, #tpu.memory_space<vmem>>, vector<16x32xbf16>,
    return
  }
  func.func @transform_0(%arg0: i32, %arg1: i32) -> (i32, i32) {
    %c0_i32 = arith.constant 0 : i32
    %c0_i32_0 = arith.constant 0 : i32
    return %arg0, %c0_i32 : i32, i32
  }
  func.func @transform_1(%arg0: i32, %arg1: i32) -> (i32, i32) {
    %c0_i32 = arith.constant 0 : i32
    %c0_i32_0 = arith.constant 0 : i32
    return %c0_i32, %arg1 : i32, i32
  }
  func.func @transform_2(%arg0: i32, %arg1: i32) -> (i32, i32) {
    %c0_i32 = arith.constant 0 : i32
    %c0_i32_0 = arith.constant 0 : i32
    return %c0_i32, %arg1 : i32, i32
  }
  func.func @transform_3(%arg0: i32, %arg1: i32) -> (i32, i32) {
    %c0_i32 = arith.constant 0 : i32
    %c0_i32_0 = arith.constant 0 : i32
    return %c0_i32, %arg1 : i32, i32
  }
  func.func @transform_4(%arg0: i32, %arg1: i32) -> (i32, i32) {
    %c0_i32 = arith.constant 0 : i32
    %c0_i32_0 = arith.constant 0 : i32
    return %c0_i32, %arg1 : i32, i32
  }
  func.func @transform_5(%arg0: i32, %arg1: i32) -> (i32, i32) {
    %c0_i32 = arith.constant 0 : i32
    %c0_i32_0 = arith.constant 0 : i32
    return %c0_i32, %arg1 : i32, i32
  }
  func.func @transform_6(%arg0: i32, %arg1: i32) -> (i32, i32) {
    %c0_i32 = arith.constant 0 : i32
    %c0_i32_0 = arith.constant 0 : i32
    return %c0_i32, %arg1 : i32, i32
  }
  func.func @transform_7(%arg0: i32, %arg1: i32) -> (i32, i32) {
    %c0_i32 = arith.constant 0 : i32
    return %arg0, %arg1 : i32, i32
  }
  func.func @transform_8(%arg0: i32, %arg1: i32) -> (i32, i32) {
    %c0_i32 = arith.constant 0 : i32
    return %arg0, %arg1 : i32, i32
  }
  func.func @transform_9(%arg0: i32, %arg1: i32) -> (i32, i32) {
    %c0_i32 = arith.constant 0 : i32
    return %arg0, %arg1 : i32, i32
  }
}

</mosaic_0001>

<llo_original>
// kernel: tpu_custom_call.1
$region0: #{tpu_custom_call.1}
  #allocation0 [shape = 'u32[]', space=smem, size = 0x4, offset = 0x4, fixed_abs, tag = 'smem constant byte address 0x4 - core index']
  #allocation1 [shape = 'u32[144,128]{1,0:T(1,128)}', space=vmem, size = 0x12000, scoped, tag = 'internal scratch']
  %s0 = inlined_call_operand.hbm [shape: bf16[16,32], index: 0, kind: input, shape index: {}]
  %s1 = inlined_call_operand.hbm [shape: bf16[32,32], index: 1, kind: input, shape index: {}]
  %s2 = inlined_call_operand.hbm [shape: bf16[32,32], index: 2, kind: input, shape index: {}]
  %s3 = inlined_call_operand.hbm [shape: bf16[32,32], index: 3, kind: input, shape index: {}]
  %s4 = inlined_call_operand.vmem [shape: f32[1,32], index: 4, kind: input, shape index: {}]
  %s5 = inlined_call_operand.vmem [shape: f32[1,32], index: 5, kind: input, shape index: {}]
  %s6 = inlined_call_operand.vmem [shape: f32[1,32], index: 6, kind: input, shape index: {}]
  %s7 = inlined_call_operand.hbm [shape: bf16[16,32], index: 7, kind: output, shape index: {0}]
  %s8 = inlined_call_operand.hbm [shape: bf16[16,32], index: 8, kind: output, shape index: {1}]
  %s9 = inlined_call_operand.hbm [shape: bf16[16,32], index: 9, kind: output, shape index: {2}]
  %10 = xla_tuple %s7, %s8, %s9
  %s11 = sld [smem:[#allocation0]]
  $region70: #{tpu_custom_call.1} parent=0
    _
  %s13 = ssub.s32 1, %s11
  %s14 = scalar_select 0, %s13, %s11
  $region1: #{tpu_custom_call.1} parent=0
    #allocation2 [shape = 'u8[4096]{0}', space=vmem, size = 0x1000, scoped, tag = 'input window, operand 0, single buffered']
    #allocation3 [shape = 's32[1]{0}', space=sflag, size = 0x4, scoped, tag = 'scoped memory for tpu_custom_call.1']
    #allocation4 [shape = 's32[1]{0}', space=sflag, size = 0x4, scoped, tag = 'scoped memory for tpu_custom_call.1']
    #allocation5 [shape = 'u8[8192]{0}', space=vmem, size = 0x2000, scoped, tag = 'input window, operand 1, single buffered']
    #allocation6 [shape = 's32[1]{0}', space=sflag, size = 0x4, scoped, tag = 'scoped memory for tpu_custom_call.1']
    #allocation7 [shape = 'u8[8192]{0}', space=vmem, size = 0x2000, scoped, tag = 'input window, operand 2, single buffered']
    #allocation8 [shape = 'u8[8192]{0}', space=vmem, size = 0x2000, scoped, tag = 'input window, operand 3, single buffered']
    #allocation9 [shape = 's32[1]{0}', space=sflag, size = 0x4, scoped, tag = 'scoped memory for tpu_custom_call.1']
    #allocation10 [shape = 'u8[4096]{0}', space=vmem, size = 0x1000, scoped, tag = 'output window, operand 0, single buffered']
    #allocation11 [shape = 'u8[4096]{0}', space=vmem, size = 0x1000, scoped, tag = 'output window, operand 1, single buffered']
    #allocation12 [shape = 's32[1]{0}', space=sflag, size = 0x4, scoped, tag = 'scoped memory for tpu_custom_call.1']
    #allocation13 [shape = 'u8[4096]{0}', space=vmem, size = 0x1000, scoped, tag = 'output window, operand 2, single buffered']
    %15 = vsyncpa [#allocation3], 0
    %16 = vsyncpa [#allocation6], 0
    %17 = vsyncpa [#allocation9], 0
    %18 = vsyncpa [#allocation4], 0
    %19 = vsyncpa [#allocation12], 0
    // Predicated region
    $region2: #{tpu_custom_call.1} parent=1 // pred_check
      _
    $region3: #{tpu_custom_call.1} parent=1 // pred_check_branch
      %21 = sbr.rel (0) target = $region5
    $region4: #{tpu_custom_call.1} parent=1 // pred_region
      %s23 = ssub.s32 128, 128
      %24 = vsyncadd [#allocation3], %s23
      %s25 = sshll.u32 [#allocation2], 4
      %s26 = int_to_ptr.vmem [resolvable:$true] %s25
      %31 = dma.hbm_to_vmem [thread:$0]  %s0, 128, %s26, [#allocation3], 64, 64, 4
    $region5: #{tpu_custom_call.1} parent=1 // pred_fallthru
      _
    // Predicated region
    $region6: #{tpu_custom_call.1} parent=1 // pred_check
      _
    $region7: #{tpu_custom_call.1} parent=1 // pred_check_branch
      %33 = sbr.rel (0) target = $region9
    $region8: #{tpu_custom_call.1} parent=1 // pred_region
      %s35 = ssub.s32 256, 256
      %36 = vsyncadd [#allocation6], %s35
      %s37 = sshll.u32 [#allocation5], 4
      %s38 = int_to_ptr.vmem [resolvable:$true] %s37
      %43 = dma.hbm_to_vmem [thread:$0]  %s1, 256, %s38, [#allocation6], 64, 64, 4
    $region9: #{tpu_custom_call.1} parent=1 // pred_fallthru
      _
    // Predicated region
    $region10: #{tpu_custom_call.1} parent=1 // pred_check
      _
    $region11: #{tpu_custom_call.1} parent=1 // pred_check_branch
      %45 = sbr.rel (0) target = $region13
    $region12: #{tpu_custom_call.1} parent=1 // pred_region
      %s47 = ssub.s32 256, 256
      %48 = vsyncadd [#allocation6], %s47
      %s49 = sshll.u32 [#allocation7], 4
      %s50 = int_to_ptr.vmem [resolvable:$true] %s49
      %55 = dma.hbm_to_vmem [thread:$0]  %s2, 256, %s50, [#allocation6], 64, 64, 4
    $region13: #{tpu_custom_call.1} parent=1 // pred_fallthru
      _
    // Predicated region
    $region14: #{tpu_custom_call.1} parent=1 // pred_check
      _
    $region15: #{tpu_custom_call.1} parent=1 // pred_check_branch
      %57 = sbr.rel (0) target = $region17
    $region16: #{tpu_custom_call.1} parent=1 // pred_region
      %s59 = ssub.s32 256, 256
      %60 = vsyncadd [#allocation9], %s59
      %s61 = sshll.u32 [#allocation8], 4
      %s62 = int_to_ptr.vmem [resolvable:$true] %s61
      %67 = dma.hbm_to_vmem [thread:$0]  %s3, 256, %s62, [#allocation9], 64, 64, 4
    $region17: #{tpu_custom_call.1} parent=1 // pred_fallthru
      _
    // Predicated region
    $region18: #{tpu_custom_call.1} parent=1 // pred_check
      _
    $region19: #{tpu_custom_call.1} parent=1 // pred_check_branch
      %69 = sbr.rel (0) target = $region21
    $region20: #{tpu_custom_call.1} parent=1 // pred_region
      _
    $region21: #{tpu_custom_call.1} parent=1 // pred_fallthru
      _
    // Predicated region
    $region22: #{tpu_custom_call.1} parent=1 // pred_check
      _
    $region23: #{tpu_custom_call.1} parent=1 // pred_check_branch
      %71 = sbr.rel (0) target = $region25
    $region24: #{tpu_custom_call.1} parent=1 // pred_region
      _
    $region25: #{tpu_custom_call.1} parent=1 // pred_fallthru
      _
    // Predicated region
    $region26: #{tpu_custom_call.1} parent=1 // pred_check
      _
    $region27: #{tpu_custom_call.1} parent=1 // pred_check_branch
      %73 = sbr.rel (0) target = $region29
    $region28: #{tpu_custom_call.1} parent=1 // pred_region
      _
    $region29: #{tpu_custom_call.1} parent=1 // pred_fallthru
      _
    // Predicated region
    $region30: #{tpu_custom_call.1} parent=1 // pred_check
      _
    $region31: #{tpu_custom_call.1} parent=1 // pred_check_branch
      %75 = sbr.rel (0) target = $region33
    $region32: #{tpu_custom_call.1} parent=1 // pred_region
      %76 = dma.done [#allocation3], 128
    $region33: #{tpu_custom_call.1} parent=1 // pred_fallthru
      _
    // Predicated region
    $region34: #{tpu_custom_call.1} parent=1 // pred_check
      _
    $region35: #{tpu_custom_call.1} parent=1 // pred_check_branch
      %78 = sbr.rel (0) target = $region37
    $region36: #{tpu_custom_call.1} parent=1 // pred_region
      %79 = dma.done [#allocation6], 256
    $region37: #{tpu_custom_call.1} parent=1 // pred_fallthru
      _
    // Predicated region
    $region38: #{tpu_custom_call.1} parent=1 // pred_check
      _
    $region39: #{tpu_custom_call.1} parent=1 // pred_check_branch
      %81 = sbr.rel (0) target = $region41
    $region40: #{tpu_custom_call.1} parent=1 // pred_region
      %82 = dma.done [#allocation6], 256
    $region41: #{tpu_custom_call.1} parent=1 // pred_fallthru
      _
    // Predicated region
    $region42: #{tpu_custom_call.1} parent=1 // pred_check
      _
    $region43: #{tpu_custom_call.1} parent=1 // pred_check_branch
      %84 = sbr.rel (0) target = $region45
    $region44: #{tpu_custom_call.1} parent=1 // pred_region
      %85 = dma.done [#allocation9], 256
    $region45: #{tpu_custom_call.1} parent=1 // pred_fallthru
      _
    %v87 = vld [vmem:[#allocation2] sm:$0xf]
    %v88 = vld [vmem:[#allocation2 + $0x4] sm:$0xf]
    %v89 = vld [vmem:[#allocation5] sm:$0xf]
    %v90 = vld [vmem:[#allocation5 + $0x4] sm:$0xf]
    %v91 = vld [vmem:[#allocation5 + $0x8] sm:$0xf]
    %v92 = vld [vmem:[#allocation5 + $0xc] sm:$0xf]
    %v93 = vld [vmem:[%s4] sm:$0x1]
    %v95 = vlaneseq
    %v96 = vshrl.u32 %v95, 7
    %v97 = vsub.s32 0, %v96
    %v98 = vrot.slane %v93, %v97
    %v102 = vunpack.c.l.b16 %v87
    %v103 = vunpack.c.l.b16 %v88
    %v104 = vpack.c.b16 %v103, %v102
    %v109 = vunpack.c.l.b16 %v89
    %v110 = vunpack.c.l.b16 %v90
    %v111 = vunpack.c.l.b16 %v91
    %v112 = vunpack.c.l.b16 %v92
    %v113 = vpack.c.b16 %v110, %v109
    %v114 = vpack.c.b16 %v112, %v111
    %vm117 = vcmask 261120
    %v119 = vsel %vm117, %v104, 0
    %121 = vmatprep.subr.bf16.mxu0 0
    %122 = vmatpush1.bf16.msra.mxu0 %v113
    %123 = vmatprep.subr.bf16.mxu0 0
    %124 = vmatpush1.bf16.msra.mxu0 %v114
    %125 = vmatprep.subr.bf16.mxu0 0
    %126 = vmatpush1.bf16.msra.mxu0 0
    %127 = vmatprep.subr.bf16.mxu0 0
    %128 = vmatpush1.bf16.msra.mxu0 0
    %129 = vmatprep.subr.bf16.mxu0 0
    %130 = vmatpush1.bf16.msra.mxu0 0
    %131 = vmatprep.subr.bf16.mxu0 0
    %132 = vmatpush1.bf16.msra.mxu0 0
    %133 = vmatprep.subr.bf16.mxu0 0
    %134 = vmatpush1.bf16.msra.mxu0 0
    %135 = vmatprep.subr.bf16.mxu0 0
    %136 = vmatpush1.bf16.msra.mxu0 0
    %137 = vmatprep.subr.bf16.mxu0 0
    %138 = vmatpush1.bf16.msra.mxu0 0
    %139 = vmatprep.subr.bf16.mxu0 0
    %140 = vmatpush1.bf16.msra.mxu0 0
    %141 = vmatprep.subr.bf16.mxu0 0
    %142 = vmatpush1.bf16.msra.mxu0 0
    %143 = vmatprep.subr.bf16.mxu0 0
    %144 = vmatpush1.bf16.msra.mxu0 0
    %145 = vmatprep.subr.bf16.mxu0 0
    %146 = vmatpush1.bf16.msra.mxu0 0
    %147 = vmatprep.subr.bf16.mxu0 0
    %148 = vmatpush1.bf16.msra.mxu0 0
    %149 = vmatprep.subr.bf16.mxu0 0
    %150 = vmatpush1.bf16.msra.mxu0 0
    %151 = vmatprep.subr.bf16.mxu0 0
    %152 = vmatpush1.bf16.msra.mxu0 0
    %153 = vmatprep.mubr.bf16.mxu0 0
    %154 = vmatmul.mubr.bf16.gmra.mrb[0].mxu0 %v119
    %v155 = vpop.f32.mrb[0].mxu0
    %v156 = vadd.f32 %v98, %v155
    %v157 = vpop.f32.mrb[0].mxu0
    %v158 = vpop.f32.mrb[0].mxu0
    %v159 = vadd.f32 %v98, %v158
    %v160 = vpop.f32.mrb[0].mxu0
    %161 = vdwg.mxu0
    %v162 = vld [vmem:[#allocation7] sm:$0xf]
    %v163 = vld [vmem:[#allocation7 + $0x4] sm:$0xf]
    %v164 = vld [vmem:[#allocation7 + $0x8] sm:$0xf]
    %v165 = vld [vmem:[#allocation7 + $0xc] sm:$0xf]
    %v166 = vld [vmem:[%s5] sm:$0x1]
    %v168 = vlaneseq
    %v169 = vshrl.u32 %v168, 7
    %v170 = vsub.s32 0, %v169
    %v171 = vrot.slane %v166, %v170
    %v177 = vunpack.c.l.b16 %v162
    %v178 = vunpack.c.l.b16 %v163
    %v179 = vunpack.c.l.b16 %v164
    %v180 = vunpack.c.l.b16 %v165
    %v181 = vpack.c.b16 %v178, %v177
    %v182 = vpack.c.b16 %v180, %v179
    %185 = vmatprep.subr.bf16.mxu0 0
    %186 = vmatpush1.bf16.msra.mxu0 %v181
    %187 = vmatprep.subr.bf16.mxu0 0
    %188 = vmatpush1.bf16.msra.mxu0 %v182
    %189 = vmatprep.subr.bf16.mxu0 0
    %190 = vmatpush1.bf16.msra.mxu0 0
    %191 = vmatprep.subr.bf16.mxu0 0
    %192 = vmatpush1.bf16.msra.mxu0 0
    %193 = vmatprep.subr.bf16.mxu0 0
    %194 = vmatpush1.bf16.msra.mxu0 0
    %195 = vmatprep.subr.bf16.mxu0 0
    %196 = vmatpush1.bf16.msra.mxu0 0
    %197 = vmatprep.subr.bf16.mxu0 0
    %198 = vmatpush1.bf16.msra.mxu0 0
    %199 = vmatprep.subr.bf16.mxu0 0
    %200 = vmatpush1.bf16.msra.mxu0 0
    %201 = vmatprep.subr.bf16.mxu0 0
    %202 = vmatpush1.bf16.msra.mxu0 0
    %203 = vmatprep.subr.bf16.mxu0 0
    %204 = vmatpush1.bf16.msra.mxu0 0
    %205 = vmatprep.subr.bf16.mxu0 0
    %206 = vmatpush1.bf16.msra.mxu0 0
    %207 = vmatprep.subr.bf16.mxu0 0
    %208 = vmatpush1.bf16.msra.mxu0 0
    %209 = vmatprep.subr.bf16.mxu0 0
    %210 = vmatpush1.bf16.msra.mxu0 0
    %211 = vmatprep.subr.bf16.mxu0 0
    %212 = vmatpush1.bf16.msra.mxu0 0
    %213 = vmatprep.subr.bf16.mxu0 0
    %214 = vmatpush1.bf16.msra.mxu0 0
    %215 = vmatprep.subr.bf16.mxu0 0
    %216 = vmatpush1.bf16.msra.mxu0 0
    %217 = vmatprep.mubr.bf16.mxu0 0
    %218 = vmatmul.mubr.bf16.gmra.mrb[0].mxu0 %v119
    %v219 = vpop.f32.mrb[0].mxu0
    %v220 = vadd.f32 %v171, %v219
    %v221 = vpop.f32.mrb[0].mxu0
    %v222 = vpop.f32.mrb[0].mxu0
    %v223 = vadd.f32 %v171, %v222
    %v224 = vpop.f32.mrb[0].mxu0
    %225 = vdwg.mxu0
    %v226 = vld [vmem:[#allocation8] sm:$0xf]
    %v227 = vld [vmem:[#allocation8 + $0x4] sm:$0xf]
    %v228 = vld [vmem:[#allocation8 + $0x8] sm:$0xf]
    %v229 = vld [vmem:[#allocation8 + $0xc] sm:$0xf]
    %v230 = vld [vmem:[%s6] sm:$0x1]
    %v232 = vlaneseq
    %v233 = vshrl.u32 %v232, 7
    %v234 = vsub.s32 0, %v233
    %v235 = vrot.slane %v230, %v234
    %v241 = vunpack.c.l.b16 %v226
    %v242 = vunpack.c.l.b16 %v227
    %v243 = vunpack.c.l.b16 %v228
    %v244 = vunpack.c.l.b16 %v229
    %v245 = vpack.c.b16 %v242, %v241
    %v246 = vpack.c.b16 %v244, %v243
    %249 = vmatprep.subr.bf16.mxu0 0
    %250 = vmatpush1.bf16.msra.mxu0 %v245
    %251 = vmatprep.subr.bf16.mxu0 0
    %252 = vmatpush1.bf16.msra.mxu0 %v246
    %253 = vmatprep.subr.bf16.mxu0 0
    %254 = vmatpush1.bf16.msra.mxu0 0
    %255 = vmatprep.subr.bf16.mxu0 0
    %256 = vmatpush1.bf16.msra.mxu0 0
    %257 = vmatprep.subr.bf16.mxu0 0
    %258 = vmatpush1.bf16.msra.mxu0 0
    %259 = vmatprep.subr.bf16.mxu0 0
    %260 = vmatpush1.bf16.msra.mxu0 0
    %261 = vmatprep.subr.bf16.mxu0 0
    %262 = vmatpush1.bf16.msra.mxu0 0
    %263 = vmatprep.subr.bf16.mxu0 0
    %264 = vmatpush1.bf16.msra.mxu0 0
    %265 = vmatprep.subr.bf16.mxu0 0
    %266 = vmatpush1.bf16.msra.mxu0 0
    %267 = vmatprep.subr.bf16.mxu0 0
    %268 = vmatpush1.bf16.msra.mxu0 0
    %269 = vmatprep.subr.bf16.mxu0 0
    %270 = vmatpush1.bf16.msra.mxu0 0
    %271 = vmatprep.subr.bf16.mxu0 0
    %272 = vmatpush1.bf16.msra.mxu0 0
    %273 = vmatprep.subr.bf16.mxu0 0
    %274 = vmatpush1.bf16.msra.mxu0 0
    %275 = vmatprep.subr.bf16.mxu0 0
    %276 = vmatpush1.bf16.msra.mxu0 0
    %277 = vmatprep.subr.bf16.mxu0 0
    %278 = vmatpush1.bf16.msra.mxu0 0
    %279 = vmatprep.subr.bf16.mxu0 0
    %280 = vmatpush1.bf16.msra.mxu0 0
    %281 = vmatprep.mubr.bf16.mxu0 0
    %282 = vmatmul.mubr.bf16.gmra.mrb[0].mxu0 %v119
    %v283 = vpop.f32.mrb[0].mxu0
    %v284 = vadd.f32 %v235, %v283
    %v285 = vpop.f32.mrb[0].mxu0
    %v286 = vpop.f32.mrb[0].mxu0
    %v287 = vadd.f32 %v235, %v286
    %v288 = vpop.f32.mrb[0].mxu0
    %289 = vdwg.mxu0
    %v290 = vpack.c.bf16 %v159, %v156
    %v292 = vunpack.c.l.b16 %v290
    %v293 = vunpack.c.h.b16 %v290
    %v294 = vpack.c.b16 %v292, %v292
    %v295 = vpack.c.b16 %v293, %v293
    %vm298 = vcmask 257024
    %299 = vst.msk [vmem:[#allocation10] sm:$0xf] %vm298, %v294
    %300 = vst.msk [vmem:[#allocation10 + $0x4] sm:$0xf] %vm298, %v295
    %v301 = vpack.c.bf16 %v223, %v220
    %v303 = vunpack.c.l.b16 %v301
    %v304 = vunpack.c.h.b16 %v301
    %v305 = vpack.c.b16 %v303, %v303
    %v306 = vpack.c.b16 %v304, %v304
    %309 = vst.msk [vmem:[#allocation11] sm:$0xf] %vm298, %v305
    %310 = vst.msk [vmem:[#allocation11 + $0x4] sm:$0xf] %vm298, %v306
    %v311 = vpack.c.bf16 %v287, %v284
    %v313 = vunpack.c.l.b16 %v311
    %v314 = vunpack.c.h.b16 %v311
    %v315 = vpack.c.b16 %v313, %v313
    %v316 = vpack.c.b16 %v314, %v314
    %319 = vst.msk [vmem:[#allocation13] sm:$0xf] %vm298, %v315
    %320 = vst.msk [vmem:[#allocation13 + $0x4] sm:$0xf] %vm298, %v316
    // Predicated region
    $region46: #{tpu_custom_call.1} parent=1 // pred_check
      _
    $region47: #{tpu_custom_call.1} parent=1 // pred_check_branch
      %322 = sbr.rel (0) target = $region49
    $region48: #{tpu_custom_call.1} parent=1 // pred_region
      %s324 = ssub.s32 128, 128
      %325 = vsyncadd [#allocation4], %s324
      %s326 = sshll.u32 [#allocation10], 4
      %s327 = int_to_ptr.vmem [resolvable:$true] %s326
      %332 = dma.vmem_to_hbm [thread:$0]  %s327, 128, %s7, [#allocation4], 64, 64, 4
    $region49: #{tpu_custom_call.1} parent=1 // pred_fallthru
      _
    // Predicated region
    $region50: #{tpu_custom_call.1} parent=1 // pred_check
      _
    $region51: #{tpu_custom_call.1} parent=1 // pred_check_branch
      %334 = sbr.rel (0) target = $region53
    $region52: #{tpu_custom_call.1} parent=1 // pred_region
      %s336 = ssub.s32 128, 128
      %337 = vsyncadd [#allocation12], %s336
      %s338 = sshll.u32 [#allocation11], 4
      %s339 = int_to_ptr.vmem [resolvable:$true] %s338
      %344 = dma.vmem_to_hbm [thread:$0]  %s339, 128, %s8, [#allocation12], 64, 64, 4
    $region53: #{tpu_custom_call.1} parent=1 // pred_fallthru
      _
    // Predicated region
    $region54: #{tpu_custom_call.1} parent=1 // pred_check
      _
    $region55: #{tpu_custom_call.1} parent=1 // pred_check_branch
      %346 = sbr.rel (0) target = $region57
    $region56: #{tpu_custom_call.1} parent=1 // pred_region
      %s348 = ssub.s32 128, 128
      %349 = vsyncadd [#allocation12], %s348
      %s350 = sshll.u32 [#allocation13], 4
      %s351 = int_to_ptr.vmem [resolvable:$true] %s350
      %356 = dma.vmem_to_hbm [thread:$0]  %s351, 128, %s9, [#allocation12], 64, 64, 4
    $region57: #{tpu_custom_call.1} parent=1 // pred_fallthru
      _
    // Predicated region
    $region58: #{tpu_custom_call.1} parent=1 // pred_check
      _
    $region59: #{tpu_custom_call.1} parent=1 // pred_check_branch
      %358 = sbr.rel (0) target = $region61
    $region60: #{tpu_custom_call.1} parent=1 // pred_region
      %359 = dma.done [#allocation4], 128
    $region61: #{tpu_custom_call.1} parent=1 // pred_fallthru
      _
    // Predicated region
    $region62: #{tpu_custom_call.1} parent=1 // pred_check
      _
    $region63: #{tpu_custom_call.1} parent=1 // pred_check_branch
      %361 = sbr.rel (0) target = $region65
    $region64: #{tpu_custom_call.1} parent=1 // pred_region
      %362 = dma.done [#allocation12], 128
    $region65: #{tpu_custom_call.1} parent=1 // pred_fallthru
      _
    // Predicated region
    $region66: #{tpu_custom_call.1} parent=1 // pred_check
      _
    $region67: #{tpu_custom_call.1} parent=1 // pred_check_branch
      %364 = sbr.rel (0) target = $region69
    $region68: #{tpu_custom_call.1} parent=1 // pred_region
      %365 = dma.done [#allocation12], 128
    $region69: #{tpu_custom_call.1} parent=1 // pred_fallthru
      _
    %366 = vsyncpa [#allocation3], 1
    %367 = vsyncpa [#allocation6], 1
    %368 = vsyncpa [#allocation9], 1
    %369 = vsyncpa [#allocation4], 1
    %370 = vsyncpa [#allocation12], 1

</llo_original>
